<compile_context>
chip_gen: v6e
topology: v6e:2x2x1
jax: 0.10.0
libtpu: 0.0.40
codegen_flags: <defaults>
</compile_context>

<pallas_src>
import jax
import jax.numpy as jnp
from jax.experimental import pallas as pl
from jax.experimental.pallas import tpu as pltpu

BN_EPS = 1e-5
LEAKY_SLOPE = 0.1
LANE = 128


def _bn_leaky(h, gamma, beta):
    """Training-mode BatchNorm1d (biased batch var) + LeakyReLU(0.1), f32 math.

    One pass over h for the statistics (sum and sum-of-squares together); the
    affine transform is folded into a single per-feature scale/shift so the
    normalization is one fused multiply-add sweep over h.
    """
    inv_n = 1.0 / h.shape[0]
    s = jnp.sum(h, axis=0, keepdims=True)           # (1, H)
    ss = jnp.sum(h * h, axis=0, keepdims=True)      # (1, H)
    mean = s * inv_n
    var = jnp.maximum(ss * inv_n - mean * mean, 0.0)
    scale = gamma * jax.lax.rsqrt(var + BN_EPS)     # (1, H)
    shift = beta - mean * scale                     # (1, H)
    hn = h * scale + shift
    # LeakyReLU(0.1): for slope in (0,1), max(x, slope*x) == leaky_relu(x).
    return jnp.maximum(hn, LEAKY_SLOPE * hn)


def cont_statistics_kernel(x_ref, w12_ref, p_ref, o_ref):
    k_pad = x_ref.shape[1]                # padded input width (multiple of 128)

    # Packed weights: rows [0:k_pad) = w1 (Kpad, H), rows [k_pad:) = w2 (H, H).
    w1 = w12_ref[0:k_pad, :]
    w2 = w12_ref[k_pad:, :]

    # Packed f32 params: rows [gamma1, beta1, gamma2, beta2, w3_0, ..., w3_{out-1}].
    g1 = p_ref[0:1, :]
    b1 = p_ref[1:2, :]
    g2 = p_ref[2:3, :]
    b2 = p_ref[3:4, :]
    w3 = p_ref[4:, :]                     # (out, H), PyTorch (out, in) layout

    # Layer 1: bf16 MXU matmul (operands pre-cast at init), f32 accumulation.
    h = jnp.dot(x_ref[...], w1, preferred_element_type=jnp.float32)
    h = _bn_leaky(h, g1, b1)

    # Layer 2: cast activations to bf16 for the MXU, accumulate in f32.
    h = jnp.dot(h.astype(jnp.bfloat16), w2, preferred_element_type=jnp.float32)
    h = _bn_leaky(h, g2, b2)

    # Output Linear.
    if o_ref.shape[-1] == 1:
        # Degenerate 1-column head: VPU multiply + lane reduce, no MXU round-trip.
        o_ref[...] = jnp.sum(h * w3, axis=-1, keepdims=True).astype(o_ref.dtype)
    else:
        o_ref[...] = jnp.dot(h.astype(jnp.bfloat16),
                             w3.T.astype(jnp.bfloat16),
                             preferred_element_type=jnp.float32).astype(o_ref.dtype)


@jax.jit
def cont_statistics_forward(x, w12, params):
    """x: (B, d_in) f32; w12: (Kpad+H, H) bf16; params: (4+out, H) f32."""
    B, d_in = x.shape
    H = w12.shape[1]
    k_pad = w12.shape[0] - H
    out_size = params.shape[0] - 4

    if d_in < k_pad:                      # lane-dense, exact (zero rows in w1)
        x = jnp.pad(x, ((0, 0), (0, k_pad - d_in)))
    x_bf = x.astype(jnp.bfloat16)

    vmem = pl.BlockSpec(memory_space=pltpu.MemorySpace.VMEM)
    return pl.pallas_call(
        cont_statistics_kernel,
        out_shape=jax.ShapeDtypeStruct((B, out_size), jnp.float32),
        in_specs=[vmem, vmem, vmem],
        out_specs=vmem,
    )(x_bf, w12, params)


def init_params(key, input_size, hidden_size, output_size):
    """Deterministic init matching the PyTorch module's __init__.

    Returns:
      w12:    (ceil(input_size/128)*128 + hidden, hidden) bf16
              -- [w1 (transposed, K zero-padded) ; w2 (transposed)] pre-packed.
      params: (4 + output_size, hidden) f32
              -- rows [gamma1, beta1, gamma2, beta2, w3 (PyTorch (out,in) layout)].
    """
    k_pad = ((input_size + LANE - 1) // LANE) * LANE
    k1, k2, k3, kg1, kg2 = jax.random.split(key, 5)
    # PyTorch Linear weight is (out, in); transpose to (in, out) for x @ W.
    w1 = (0.02 * jax.random.normal(k1, (hidden_size, input_size), jnp.float32)).T
    w1 = jnp.pad(w1, ((0, k_pad - input_size), (0, 0)))   # zero rows: exact math
    w2 = (0.02 * jax.random.normal(k2, (hidden_size, hidden_size), jnp.float32)).T
    w3 = 0.02 * jax.random.normal(k3, (output_size, hidden_size), jnp.float32)
    g1 = 1.0 + 0.02 * jax.random.normal(kg1, (hidden_size,), jnp.float32)
    g2 = 1.0 + 0.02 * jax.random.normal(kg2, (hidden_size,), jnp.float32)

    w12 = jnp.concatenate([w1, w2], axis=0).astype(jnp.bfloat16)
    params = jnp.concatenate(
        [g1[None, :], jnp.zeros((1, hidden_size), jnp.float32),
         g2[None, :], jnp.zeros((1, hidden_size), jnp.float32),
         w3], axis=0).astype(jnp.float32)
    return w12, params


def reference_forward(x, w12, params):
    """Pure-JAX reference using the same bf16-operand / f32-accumulate math."""
    H = w12.shape[1]
    k_pad = w12.shape[0] - H
    if x.shape[1] < k_pad:
        x = jnp.pad(x, ((0, 0), (0, k_pad - x.shape[1])))
    w1 = w12[:k_pad, :]
    w2 = w12[k_pad:, :]
    g1, b1, g2, b2 = (params[i:i + 1, :] for i in range(4))
    w3 = params[4:, :]

    h = jnp.dot(x.astype(jnp.bfloat16), w1, preferred_element_type=jnp.float32)
    h = _bn_leaky(h, g1, b1)
    h = jnp.dot(h.astype(jnp.bfloat16), w2, preferred_element_type=jnp.float32)
    h = _bn_leaky(h, g2, b2)
    return h @ w3.T


if __name__ == "__main__":
    # Small shapes consistent with the module (Linear/BN/LeakyReLU MLP head).
    # B is a multiple of 8 (sublane-aligned); D_IN < 128 exercises the padding path.
    B, D_IN, HIDDEN, D_OUT = 32, 64, 128, 1

    key = jax.random.PRNGKey(0)
    kx, kp = jax.random.split(key)
    x = jax.random.normal(kx, (B, D_IN), jnp.float32)
    w12, params = init_params(kp, D_IN, HIDDEN, D_OUT)

    out = cont_statistics_forward(x, w12, params)
    out = jax.block_until_ready(out)

    ref = reference_forward(x, w12, params)
    assert out.shape == (B, D_OUT)
    # bf16 matmul operands => tolerance a bit above f32-exact.
    assert jnp.allclose(out, ref, atol=5e-3, rtol=5e-3), "mismatch vs reference"

    print("KERNEL_OK")
</pallas_src>

<mosaic_0001>
module attributes {stable_mosaic.version = 11 : i64} {
  func.func @cont_statistics_kernel(%arg0: memref<32x128xbf16, #tpu.memory_space<vmem>>, %arg1: memref<256x128xbf16, #tpu.memory_space<vmem>>, %arg2: memref<5x128xf32, #tpu.memory_space<vmem>>, %arg3: memref<32x1xf32, #tpu.memory_space<vmem>>) attributes {dimension_semantics = [], scalar_prefetch = 0 : i64, scratch_operands = 0 : i64, tpu.core_type = #tpu.core_type<tc>} {
    %c0 = arith.constant 0 : index
    %c0_0 = arith.constant 0 : index
    %0 = vector.load %arg1[%c0, %c0_0] : memref<256x128xbf16, #tpu.memory_space<vmem>>, vector<128x128xbf16>
    %c128 = arith.constant 128 : index
    %c0_1 = arith.constant 0 : index
    %1 = vector.load %arg1[%c128, %c0_1] : memref<256x128xbf16, #tpu.memory_space<vmem>>, vector<128x128xbf16>
    %c0_2 = arith.constant 0 : index
    %c0_3 = arith.constant 0 : index
    %2 = vector.load %arg2[%c0_2, %c0_3] : memref<5x128xf32, #tpu.memory_space<vmem>>, vector<1x128xf32>
    %c1 = arith.constant 1 : index
    %c0_4 = arith.constant 0 : index
    %3 = vector.load %arg2[%c1, %c0_4] : memref<5x128xf32, #tpu.memory_space<vmem>>, vector<1x128xf32>
    %c2 = arith.constant 2 : index
    %c0_5 = arith.constant 0 : index
    %4 = vector.load %arg2[%c2, %c0_5] : memref<5x128xf32, #tpu.memory_space<vmem>>, vector<1x128xf32>
    %c3 = arith.constant 3 : index
    %c0_6 = arith.constant 0 : index
    %5 = vector.load %arg2[%c3, %c0_6] : memref<5x128xf32, #tpu.memory_space<vmem>>, vector<1x128xf32>
    %c4 = arith.constant 4 : index
    %c0_7 = arith.constant 0 : index
    %6 = vector.load %arg2[%c4, %c0_7] : memref<5x128xf32, #tpu.memory_space<vmem>>, vector<1x128xf32>
    %c0_8 = arith.constant 0 : index
    %c0_9 = arith.constant 0 : index
    %7 = vector.load %arg0[%c0_8, %c0_9] : memref<32x128xbf16, #tpu.memory_space<vmem>>, vector<32x128xbf16>
    %cst = arith.constant dense<0.000000e+00> : vector<32x128xf32>
    %8 = tpu.matmul %7, %0, %cst {dimension_numbers = #tpu.dot_dimension_numbers<[1], [0], [0], [1], [0, 0, 1, 1], [], []>} : vector<32x128xbf16>, vector<128x128xbf16>, vector<32x128xf32> -> vector<32x128xf32>
    %cst_10 = arith.constant dense<0.000000e+00> : vector<128xf32>
    %9 = vector.multi_reduction <add>, %8, %cst_10 [0] : vector<32x128xf32> to vector<128xf32>
    %10 = vector.shape_cast %9 : vector<128xf32> to vector<1x128xf32>
    %11 = arith.mulf %8, %8 : vector<32x128xf32>
    %cst_11 = arith.constant dense<0.000000e+00> : vector<128xf32>
    %12 = vector.multi_reduction <add>, %11, %cst_11 [0] : vector<32x128xf32> to vector<128xf32>
    %13 = vector.shape_cast %12 : vector<128xf32> to vector<1x128xf32>
    %cst_12 = arith.constant 3.125000e-02 : f32
    %14 = vector.broadcast %cst_12 : f32 to vector<1x128xf32>
    %15 = arith.mulf %10, %14 : vector<1x128xf32>
    %cst_13 = arith.constant 3.125000e-02 : f32
    %16 = vector.broadcast %cst_13 : f32 to vector<1x128xf32>
    %17 = arith.mulf %13, %16 : vector<1x128xf32>
    %18 = arith.mulf %15, %15 : vector<1x128xf32>
    %19 = arith.subf %17, %18 : vector<1x128xf32>
    %cst_14 = arith.constant 0.000000e+00 : f32
    %20 = vector.broadcast %cst_14 : f32 to vector<1x128xf32>
    %21 = arith.maximumf %19, %20 : vector<1x128xf32>
    %cst_15 = arith.constant 9.99999974E-6 : f32
    %22 = vector.broadcast %cst_15 : f32 to vector<1x128xf32>
    %23 = arith.addf %21, %22 : vector<1x128xf32>
    %24 = math.rsqrt %23 : vector<1x128xf32>
    %25 = arith.mulf %2, %24 : vector<1x128xf32>
    %26 = arith.mulf %15, %25 : vector<1x128xf32>
    %27 = arith.subf %3, %26 : vector<1x128xf32>
    %28 = vector.broadcast %25 : vector<1x128xf32> to vector<32x128xf32>
    %29 = arith.mulf %8, %28 : vector<32x128xf32>
    %30 = vector.broadcast %27 : vector<1x128xf32> to vector<32x128xf32>
    %31 = arith.addf %29, %30 : vector<32x128xf32>
    %cst_16 = arith.constant 1.000000e-01 : f32
    %32 = vector.broadcast %cst_16 : f32 to vector<32x128xf32>
    %33 = arith.mulf %32, %31 : vector<32x128xf32>
    %34 = arith.maximumf %31, %33 : vector<32x128xf32>
    %35 = arith.truncf %34 : vector<32x128xf32> to vector<32x128xbf16>
    %cst_17 = arith.constant dense<0.000000e+00> : vector<32x128xf32>
    %36 = tpu.matmul %35, %1, %cst_17 {dimension_numbers = #tpu.dot_dimension_numbers<[1], [0], [0], [1], [0, 0, 1, 1], [], []>} : vector<32x128xbf16>, vector<128x128xbf16>, vector<32x128xf32> -> vector<32x128xf32>
    %cst_18 = arith.constant dense<0.000000e+00> : vector<128xf32>
    %37 = vector.multi_reduction <add>, %36, %cst_18 [0] : vector<32x128xf32> to vector<128xf32>
    %38 = vector.shape_cast %37 : vector<128xf32> to vector<1x128xf32>
    %39 = arith.mulf %36, %36 : vector<32x128xf32>
    %cst_19 = arith.constant dense<0.000000e+00> : vector<128xf32>
    %40 = vector.multi_reduction <add>, %39, %cst_19 [0] : vector<32x128xf32> to vector<128xf32>
    %41 = vector.shape_cast %40 : vector<128xf32> to vector<1x128xf32>
    %cst_20 = arith.constant 3.125000e-02 : f32
    %42 = vector.broadcast %cst_20 : f32 to vector<1x128xf32>
    %43 = arith.mulf %38, %42 : vector<1x128xf32>
    %cst_21 = arith.constant 3.125000e-02 : f32
    %44 = vector.broadcast %cst_21 : f32 to vector<1x128xf32>
    %45 = arith.mulf %41, %44 : vector<1x128xf32>
    %46 = arith.mulf %43, %43 : vector<1x128xf32>
    %47 = arith.subf %45, %46 : vector<1x128xf32>
    %cst_22 = arith.constant 0.000000e+00 : f32
    %48 = vector.broadcast %cst_22 : f32 to vector<1x128xf32>
    %49 = arith.maximumf %47, %48 : vector<1x128xf32>
    %cst_23 = arith.constant 9.99999974E-6 : f32
    %50 = vector.broadcast %cst_23 : f32 to vector<1x128xf32>
    %51 = arith.addf %49, %50 : vector<1x128xf32>
    %52 = math.rsqrt %51 : vector<1x128xf32>
    %53 = arith.mulf %4, %52 : vector<1x128xf32>
    %54 = arith.mulf %43, %53 : vector<1x128xf32>
    %55 = arith.subf %5, %54 : vector<1x128xf32>
    %56 = vector.broadcast %53 : vector<1x128xf32> to vector<32x128xf32>
    %57 = arith.mulf %36, %56 : vector<32x128xf32>
    %58 = vector.broadcast %55 : vector<1x128xf32> to vector<32x128xf32>
    %59 = arith.addf %57, %58 : vector<32x128xf32>
    %cst_24 = arith.constant 1.000000e-01 : f32
    %60 = vector.broadcast %cst_24 : f32 to vector<32x128xf32>
    %61 = arith.mulf %60, %59 : vector<32x128xf32>
    %62 = arith.maximumf %59, %61 : vector<32x128xf32>
    %63 = vector.broadcast %6 : vector<1x128xf32> to vector<32x128xf32>
    %64 = arith.mulf %62, %63 : vector<32x128xf32>
    %cst_25 = arith.constant dense<0.000000e+00> : vector<32xf32>
    %65 = vector.multi_reduction <add>, %64, %cst_25 [1] : vector<32x128xf32> to vector<32xf32>
    %66 = vector.shape_cast %65 : vector<32xf32> to vector<32x1xf32>
    %c0_26 = arith.constant 0 : index
    %c0_27 = arith.constant 0 : index
    %67 = vector.load %arg3[%c0_26, %c0_27] : memref<32x1xf32, #tpu.memory_space<vmem>>, vector<32x1xf32>
    tpu.vector_store %arg3[%c0_26, %c0_27], %66 {strides = array<i32>} : memref<32x1xf32, #tpu.memory_space<vmem>>, vector<32x1xf32>,
    return
  }
}

</mosaic_0001>

<llo_original>
// kernel: cont_statistics_forward.1
$region0: #{cont_statistics_forward.1}
  #allocation0 [shape = 'u32[]', space=smem, size = 0x4, offset = 0x4, fixed_abs, tag = 'smem constant byte address 0x4 - core index']
  #allocation1 [shape = 'u32[144,128]{1,0:T(1,128)}', space=vmem, size = 0x12000, scoped, tag = 'internal scratch']
  %s0 = inlined_call_operand.vmem [shape: bf16[32,128], index: 0, kind: input, shape index: {}]
  %s1 = inlined_call_operand.hbm [shape: bf16[256,128], index: 1, kind: input, shape index: {}]
  %s2 = inlined_call_operand.vmem [shape: f32[5,128], index: 2, kind: input, shape index: {}]
  %s3 = inlined_call_operand.vmem [shape: f32[32,1], index: 3, kind: output, shape index: {}]
  %s4 = sld [smem:[#allocation0]]
  $region26: #{cont_statistics_forward.1} parent=0
    _
  %s6 = ssub.s32 1, %s4
  %s7 = scalar_select 0, %s6, %s4
  $region1: #{cont_statistics_forward.1} parent=0
    #allocation2 [shape = 'u8[65536]{0}', space=vmem, size = 0x10000, scoped, tag = 'input window, operand 1, single buffered']
    #allocation3 [shape = 's32[1]{0}', space=sflag, size = 0x4, scoped, tag = 'scoped memory for cont_statistics_forward.1']
    %8 = vsyncpa [#allocation3], 0
    // Predicated region
    $region2: #{cont_statistics_forward.1} parent=1 // pred_check
      _
    $region3: #{cont_statistics_forward.1} parent=1 // pred_check_branch
      %10 = sbr.rel (0) target = $region5
    $region4: #{cont_statistics_forward.1} parent=1 // pred_region
      _
    $region5: #{cont_statistics_forward.1} parent=1 // pred_fallthru
      _
    // Predicated region
    $region6: #{cont_statistics_forward.1} parent=1 // pred_check
      _
    $region7: #{cont_statistics_forward.1} parent=1 // pred_check_branch
      %12 = sbr.rel (0) target = $region9
    $region8: #{cont_statistics_forward.1} parent=1 // pred_region
      %s14 = ssub.s32 2048, 2048
      %15 = vsyncadd [#allocation3], %s14
      %s16 = sshll.u32 [#allocation2], 4
      %s17 = int_to_ptr.vmem [resolvable:$true] %s16
      %22 = dma.hbm_to_vmem [thread:$0]  %s1, 2048, %s17, [#allocation3], 64, 64, 4
    $region9: #{cont_statistics_forward.1} parent=1 // pred_fallthru
      _
    // Predicated region
    $region10: #{cont_statistics_forward.1} parent=1 // pred_check
      _
    $region11: #{cont_statistics_forward.1} parent=1 // pred_check_branch
      %24 = sbr.rel (0) target = $region13
    $region12: #{cont_statistics_forward.1} parent=1 // pred_region
      _
    $region13: #{cont_statistics_forward.1} parent=1 // pred_fallthru
      _
    // Predicated region
    $region14: #{cont_statistics_forward.1} parent=1 // pred_check
      _
    $region15: #{cont_statistics_forward.1} parent=1 // pred_check_branch
      %26 = sbr.rel (0) target = $region17
    $region16: #{cont_statistics_forward.1} parent=1 // pred_region
      %27 = dma.done [#allocation3], 2048
    $region17: #{cont_statistics_forward.1} parent=1 // pred_fallthru
      _
    %v29 = vld [vmem:[#allocation2] sm:$0xf]
    %v30 = vld [vmem:[#allocation2 + $0x4] sm:$0xf]
    %v31 = vld [vmem:[#allocation2 + $0x8] sm:$0xf]
    %v32 = vld [vmem:[#allocation2 + $0xc] sm:$0xf]
    %v33 = vld [vmem:[#allocation2 + $0x10] sm:$0xf]
    %v34 = vld [vmem:[#allocation2 + $0x14] sm:$0xf]
    %v35 = vld [vmem:[#allocation2 + $0x18] sm:$0xf]
    %v36 = vld [vmem:[#allocation2 + $0x1c] sm:$0xf]
    %v37 = vld [vmem:[#allocation2 + $0x20] sm:$0xf]
    %v38 = vld [vmem:[#allocation2 + $0x24] sm:$0xf]
    %v39 = vld [vmem:[#allocation2 + $0x28] sm:$0xf]
    %v40 = vld [vmem:[#allocation2 + $0x2c] sm:$0xf]
    %v41 = vld [vmem:[#allocation2 + $0x30] sm:$0xf]
    %v42 = vld [vmem:[#allocation2 + $0x34] sm:$0xf]
    %v43 = vld [vmem:[#allocation2 + $0x38] sm:$0xf]
    %v44 = vld [vmem:[#allocation2 + $0x3c] sm:$0xf]
    %v45 = vld [vmem:[#allocation2 + $0x40] sm:$0xf]
    %v46 = vld [vmem:[#allocation2 + $0x44] sm:$0xf]
    %v47 = vld [vmem:[#allocation2 + $0x48] sm:$0xf]
    %v48 = vld [vmem:[#allocation2 + $0x4c] sm:$0xf]
    %v49 = vld [vmem:[#allocation2 + $0x50] sm:$0xf]
    %v50 = vld [vmem:[#allocation2 + $0x54] sm:$0xf]
    %v51 = vld [vmem:[#allocation2 + $0x58] sm:$0xf]
    %v52 = vld [vmem:[#allocation2 + $0x5c] sm:$0xf]
    %v53 = vld [vmem:[#allocation2 + $0x60] sm:$0xf]
    %v54 = vld [vmem:[#allocation2 + $0x64] sm:$0xf]
    %v55 = vld [vmem:[#allocation2 + $0x68] sm:$0xf]
    %v56 = vld [vmem:[#allocation2 + $0x6c] sm:$0xf]
    %v57 = vld [vmem:[#allocation2 + $0x70] sm:$0xf]
    %v58 = vld [vmem:[#allocation2 + $0x74] sm:$0xf]
    %v59 = vld [vmem:[#allocation2 + $0x78] sm:$0xf]
    %v60 = vld [vmem:[#allocation2 + $0x7c] sm:$0xf]
    %v61 = vld [vmem:[%s2] sm:$0x1]
    %v62 = vld [vmem:[%s2 + $0x1] sm:$0x1]
    %v63 = vld [vmem:[%s2 + $0x2] sm:$0x1]
    %v64 = vld [vmem:[%s2 + $0x3] sm:$0x1]
    %v65 = vld [vmem:[%s2 + $0x4] sm:$0x1]
    %v66 = vld [vmem:[%s0] sm:$0xf]
    %v67 = vld [vmem:[%s0 + $0x4] sm:$0xf]
    %v68 = vld [vmem:[%s0 + $0x8] sm:$0xf]
    %v69 = vld [vmem:[%s0 + $0xc] sm:$0xf]
    %v74 = vunpack.c.l.b16 %v66
    %v75 = vunpack.c.l.b16 %v67
    %v76 = vunpack.c.l.b16 %v68
    %v77 = vunpack.c.l.b16 %v69
    %v78 = vpack.c.b16 %v75, %v74
    %v79 = vpack.c.b16 %v77, %v76
    %v98 = vunpack.c.l.b16 %v29
    %v99 = vunpack.c.l.b16 %v30
    %v100 = vunpack.c.l.b16 %v31
    %v101 = vunpack.c.l.b16 %v32
    %v102 = vunpack.c.l.b16 %v33
    %v103 = vunpack.c.l.b16 %v34
    %v104 = vunpack.c.l.b16 %v35
    %v105 = vunpack.c.l.b16 %v36
    %v106 = vunpack.c.l.b16 %v37
    %v107 = vunpack.c.l.b16 %v38
    %v108 = vunpack.c.l.b16 %v39
    %v109 = vunpack.c.l.b16 %v40
    %v110 = vunpack.c.l.b16 %v41
    %v111 = vunpack.c.l.b16 %v42
    %v112 = vunpack.c.l.b16 %v43
    %v113 = vunpack.c.l.b16 %v44
    %v114 = vpack.c.b16 %v99, %v98
    %v115 = vpack.c.b16 %v101, %v100
    %v116 = vpack.c.b16 %v103, %v102
    %v117 = vpack.c.b16 %v105, %v104
    %v118 = vpack.c.b16 %v107, %v106
    %v119 = vpack.c.b16 %v109, %v108
    %v120 = vpack.c.b16 %v111, %v110
    %v121 = vpack.c.b16 %v113, %v112
    %130 = vmatprep.subr.bf16.mxu0 0
    %131 = vmatpush1.bf16.msra.mxu0 %v121
    %132 = vmatprep.subr.bf16.mxu0 0
    %133 = vmatpush1.bf16.msra.mxu0 %v120
    %134 = vmatprep.subr.bf16.mxu0 0
    %135 = vmatpush1.bf16.msra.mxu0 %v119
    %136 = vmatprep.subr.bf16.mxu0 0
    %137 = vmatpush1.bf16.msra.mxu0 %v118
    %138 = vmatprep.subr.bf16.mxu0 0
    %139 = vmatpush1.bf16.msra.mxu0 %v117
    %140 = vmatprep.subr.bf16.mxu0 0
    %141 = vmatpush1.bf16.msra.mxu0 %v116
    %142 = vmatprep.subr.bf16.mxu0 0
    %143 = vmatpush1.bf16.msra.mxu0 %v115
    %144 = vmatprep.subr.bf16.mxu0 0
    %145 = vmatpush1.bf16.msra.mxu0 %v114
    %146 = vmatprep.subr.bf16.mxu0 0
    %147 = vmatpush2.bf16.msra.mxu0 0
    %148 = vmatprep.subr.bf16.mxu0 0
    %149 = vmatpush2.bf16.msra.mxu0 0
    %150 = vmatprep.subr.bf16.mxu0 0
    %151 = vmatpush2.bf16.msra.mxu0 0
    %152 = vmatprep.subr.bf16.mxu0 0
    %153 = vmatpush2.bf16.msra.mxu0 0
    %154 = vmatprep.subr.bf16.mxu0 0
    %155 = vmatpush2.bf16.msra.mxu0 0
    %156 = vmatprep.subr.bf16.mxu0 0
    %157 = vmatpush2.bf16.msra.mxu0 0
    %158 = vmatprep.subr.bf16.mxu0 0
    %159 = vmatpush2.bf16.msra.mxu0 0
    %160 = vmatprep.subr.bf16.mxu0 0
    %161 = vmatpush2.bf16.msra.mxu0 0
    %162 = vmatprep.mubr.bf16.mxu0 0
    %163 = vmatmul.mubr.bf16.gmra.mxu0 %v78
    %v164 = vpop.f32.mrf.mxu0
    %v165 = vadd.f32 0.0, %v164
    %v166 = vpop.f32.mrf.mxu0
    %v167 = vpop.f32.mrf.mxu0
    %v168 = vadd.f32 0.0, %v167
    %v169 = vpop.f32.mrf.mxu0
    %170 = vmatprep.mubr.bf16.mxu0 0
    %171 = vmatmul.mubr.bf16.gmra.mxu0 %v79
    %v172 = vpop.f32.mrf.mxu0
    %v173 = vadd.f32 0.0, %v172
    %v174 = vpop.f32.mrf.mxu0
    %v175 = vpop.f32.mrf.mxu0
    %v176 = vadd.f32 0.0, %v175
    %v177 = vpop.f32.mrf.mxu0
    %178 = vdwg.mxu0
    %v179 = vadd.f32 %v165, %v168
    %v180 = vadd.f32 %v179, %v173
    %v181 = vadd.f32 %v180, %v176
    %v182 = vrot.slane %v181, 4
    %v183 = vadd.f32 %v181, %v182
    %v184 = vrot.slane %v183, 2
    %v185 = vadd.f32 %v183, %v184
    %v186 = vrot.slane %v185, 1
    %v187 = vadd.f32 %v185, %v186
    %v188 = vmul.f32 %v165, %v165
    %v189 = vmul.f32 %v168, %v168
    %v190 = vmul.f32 %v173, %v173
    %v191 = vmul.f32 %v176, %v176
    %v192 = vadd.f32 %v188, %v189
    %v193 = vadd.f32 %v192, %v190
    %v194 = vadd.f32 %v193, %v191
    %v195 = vrot.slane %v194, 4
    %v196 = vadd.f32 %v194, %v195
    %v197 = vrot.slane %v196, 2
    %v198 = vadd.f32 %v196, %v197
    %v199 = vrot.slane %v198, 1
    %v200 = vadd.f32 %v198, %v199
    %v201 = vmul.f32 %v187, 0.03125
    %v202 = vmul.f32 %v200, 0.03125
    %v203 = vmul.f32 %v201, %v201
    %v204 = vsub.f32 %v202, %v203
    %v205 = vmax.f32 %v204, 0.0
    %v206 = vadd.f32 %v205, 1e-05
    %v207 = vrsqrt.pop %v206
    %v208 = vmul.f32 %v61, %v207
    %v209 = vmul.f32 %v201, %v208
    %v210 = vsub.f32 %v62, %v209
    %v211 = vlaneseq
    %v212 = vshrl.u32 %v211, 7
    %v213 = vsub.s32 0, %v212
    %v214 = vrot.slane %v208, %v213
    %v215 = vmul.f32 %v165, %v214
    %v216 = vmul.f32 %v168, %v214
    %v217 = vmul.f32 %v173, %v214
    %v218 = vmul.f32 %v176, %v214
    %v219 = vlaneseq
    %v220 = vshrl.u32 %v219, 7
    %v221 = vsub.s32 0, %v220
    %v222 = vrot.slane %v210, %v221
    %v223 = vadd.f32 %v215, %v222
    %v224 = vadd.f32 %v216, %v222
    %v225 = vadd.f32 %v217, %v222
    %v226 = vadd.f32 %v218, %v222
    %v227 = vmul.f32 %v223, 0.1
    %v228 = vmul.f32 %v224, 0.1
    %v229 = vmul.f32 %v225, 0.1
    %v230 = vmul.f32 %v226, 0.1
    %v231 = vmax.f32 %v223, %v227
    %v232 = vmax.f32 %v224, %v228
    %v233 = vmax.f32 %v225, %v229
    %v234 = vmax.f32 %v226, %v230
    %v235 = vpack.c.bf16 %v232, %v231
    %v236 = vpack.c.bf16 %v234, %v233
    %v253 = vunpack.c.l.b16 %v45
    %v254 = vunpack.c.l.b16 %v46
    %v255 = vunpack.c.l.b16 %v47
    %v256 = vunpack.c.l.b16 %v48
    %v257 = vunpack.c.l.b16 %v49
    %v258 = vunpack.c.l.b16 %v50
    %v259 = vunpack.c.l.b16 %v51
    %v260 = vunpack.c.l.b16 %v52
    %v261 = vunpack.c.l.b16 %v53
    %v262 = vunpack.c.l.b16 %v54
    %v263 = vunpack.c.l.b16 %v55
    %v264 = vunpack.c.l.b16 %v56
    %v265 = vunpack.c.l.b16 %v57
    %v266 = vunpack.c.l.b16 %v58
    %v267 = vunpack.c.l.b16 %v59
    %v268 = vunpack.c.l.b16 %v60
    %v269 = vpack.c.b16 %v254, %v253
    %v270 = vpack.c.b16 %v256, %v255
    %v271 = vpack.c.b16 %v258, %v257
    %v272 = vpack.c.b16 %v260, %v259
    %v273 = vpack.c.b16 %v262, %v261
    %v274 = vpack.c.b16 %v264, %v263
    %v275 = vpack.c.b16 %v266, %v265
    %v276 = vpack.c.b16 %v268, %v267
    %285 = vmatprep.subr.bf16.mxu0 0
    %286 = vmatpush1.bf16.msra.mxu0 %v276
    %287 = vmatprep.subr.bf16.mxu0 0
    %288 = vmatpush1.bf16.msra.mxu0 %v275
    %289 = vmatprep.subr.bf16.mxu0 0
    %290 = vmatpush1.bf16.msra.mxu0 %v274
    %291 = vmatprep.subr.bf16.mxu0 0
    %292 = vmatpush1.bf16.msra.mxu0 %v273
    %293 = vmatprep.subr.bf16.mxu0 0
    %294 = vmatpush1.bf16.msra.mxu0 %v272
    %295 = vmatprep.subr.bf16.mxu0 0
    %296 = vmatpush1.bf16.msra.mxu0 %v271
    %297 = vmatprep.subr.bf16.mxu0 0
    %298 = vmatpush1.bf16.msra.mxu0 %v270
    %299 = vmatprep.subr.bf16.mxu0 0
    %300 = vmatpush1.bf16.msra.mxu0 %v269
    %301 = vmatprep.subr.bf16.mxu0 0
    %302 = vmatpush2.bf16.msra.mxu0 0
    %303 = vmatprep.subr.bf16.mxu0 0
    %304 = vmatpush2.bf16.msra.mxu0 0
    %305 = vmatprep.subr.bf16.mxu0 0
    %306 = vmatpush2.bf16.msra.mxu0 0
    %307 = vmatprep.subr.bf16.mxu0 0
    %308 = vmatpush2.bf16.msra.mxu0 0
    %309 = vmatprep.subr.bf16.mxu0 0
    %310 = vmatpush2.bf16.msra.mxu0 0
    %311 = vmatprep.subr.bf16.mxu0 0
    %312 = vmatpush2.bf16.msra.mxu0 0
    %313 = vmatprep.subr.bf16.mxu0 0
    %314 = vmatpush2.bf16.msra.mxu0 0
    %315 = vmatprep.subr.bf16.mxu0 0
    %316 = vmatpush2.bf16.msra.mxu0 0
    %317 = vmatprep.mubr.bf16.mxu0 0
    %318 = vmatmul.mubr.bf16.gmra.mxu0 %v235
    %v319 = vpop.f32.mrf.mxu0
    %v320 = vadd.f32 0.0, %v319
    %v321 = vpop.f32.mrf.mxu0
    %v322 = vpop.f32.mrf.mxu0
    %v323 = vadd.f32 0.0, %v322
    %v324 = vpop.f32.mrf.mxu0
    %325 = vmatprep.mubr.bf16.mxu0 0
    %326 = vmatmul.mubr.bf16.gmra.mxu0 %v236
    %v327 = vpop.f32.mrf.mxu0
    %v328 = vadd.f32 0.0, %v327
    %v329 = vpop.f32.mrf.mxu0
    %v330 = vpop.f32.mrf.mxu0
    %v331 = vadd.f32 0.0, %v330
    %v332 = vpop.f32.mrf.mxu0
    %333 = vdwg.mxu0
    %v334 = vadd.f32 %v320, %v323
    %v335 = vadd.f32 %v334, %v328
    %v336 = vadd.f32 %v335, %v331
    %v337 = vrot.slane %v336, 4
    %v338 = vadd.f32 %v336, %v337
    %v339 = vrot.slane %v338, 2
    %v340 = vadd.f32 %v338, %v339
    %v341 = vrot.slane %v340, 1
    %v342 = vadd.f32 %v340, %v341
    %v343 = vmul.f32 %v320, %v320
    %v344 = vmul.f32 %v323, %v323
    %v345 = vmul.f32 %v328, %v328
    %v346 = vmul.f32 %v331, %v331
    %v347 = vadd.f32 %v343, %v344
    %v348 = vadd.f32 %v347, %v345
    %v349 = vadd.f32 %v348, %v346
    %v350 = vrot.slane %v349, 4
    %v351 = vadd.f32 %v349, %v350
    %v352 = vrot.slane %v351, 2
    %v353 = vadd.f32 %v351, %v352
    %v354 = vrot.slane %v353, 1
    %v355 = vadd.f32 %v353, %v354
    %v356 = vmul.f32 %v342, 0.03125
    %v357 = vmul.f32 %v355, 0.03125
    %v358 = vmul.f32 %v356, %v356
    %v359 = vsub.f32 %v357, %v358
    %v360 = vmax.f32 %v359, 0.0
    %v361 = vadd.f32 %v360, 1e-05
    %v362 = vrsqrt.pop %v361
    %v363 = vmul.f32 %v63, %v362
    %v364 = vmul.f32 %v356, %v363
    %v365 = vsub.f32 %v64, %v364
    %v366 = vlaneseq
    %v367 = vshrl.u32 %v366, 7
    %v368 = vsub.s32 0, %v367
    %v369 = vrot.slane %v363, %v368
    %v370 = vmul.f32 %v320, %v369
    %v371 = vmul.f32 %v323, %v369
    %v372 = vmul.f32 %v328, %v369
    %v373 = vmul.f32 %v331, %v369
    %v374 = vlaneseq
    %v375 = vshrl.u32 %v374, 7
    %v376 = vsub.s32 0, %v375
    %v377 = vrot.slane %v365, %v376
    %v378 = vadd.f32 %v370, %v377
    %v379 = vadd.f32 %v371, %v377
    %v380 = vadd.f32 %v372, %v377
    %v381 = vadd.f32 %v373, %v377
    %v382 = vmul.f32 %v378, 0.1
    %v383 = vmul.f32 %v379, 0.1
    %v384 = vmul.f32 %v380, 0.1
    %v385 = vmul.f32 %v381, 0.1
    %v386 = vmax.f32 %v378, %v382
    %v387 = vmax.f32 %v379, %v383
    %v388 = vmax.f32 %v380, %v384
    %v389 = vmax.f32 %v381, %v385
    %v390 = vlaneseq
    %v391 = vshrl.u32 %v390, 7
    %v392 = vsub.s32 0, %v391
    %v393 = vrot.slane %v65, %v392
    %v394 = vmul.f32 %v386, %v393
    %v395 = vmul.f32 %v387, %v393
    %v396 = vmul.f32 %v388, %v393
    %v397 = vmul.f32 %v389, %v393
    %398 = vadd.xlane.f32.xlu0 %v394
    %v399 = vpop.xlane.xlu0 %398
    %400 = vadd.xlane.f32.xlu0 %v395
    %v401 = vpop.xlane.xlu0 %400
    %402 = vadd.xlane.f32.xlu0 %v396
    %v403 = vpop.xlane.xlu0 %402
    %404 = vadd.xlane.f32.xlu0 %v397
    %v405 = vpop.xlane.xlu0 %404
    %vm406 = vcmask 7168
    %407 = vst.msk [vmem:[%s3] sm:$0xff] %vm406, %v399
    %408 = vst.msk [vmem:[%s3 + $0x8] sm:$0xff] %vm406, %v401
    %409 = vst.msk [vmem:[%s3 + $0x10] sm:$0xff] %vm406, %v403
    %410 = vst.msk [vmem:[%s3 + $0x18] sm:$0xff] %vm406, %v405
    // Predicated region
    $region18: #{cont_statistics_forward.1} parent=1 // pred_check
      _
    $region19: #{cont_statistics_forward.1} parent=1 // pred_check_branch
      %412 = sbr.rel (0) target = $region21
    $region20: #{cont_statistics_forward.1} parent=1 // pred_region
      _
    $region21: #{cont_statistics_forward.1} parent=1 // pred_fallthru
      _
    // Predicated region
    $region22: #{cont_statistics_forward.1} parent=1 // pred_check
      _
    $region23: #{cont_statistics_forward.1} parent=1 // pred_check_branch
      %414 = sbr.rel (0) target = $region25
    $region24: #{cont_statistics_forward.1} parent=1 // pred_region
      _
    $region25: #{cont_statistics_forward.1} parent=1 // pred_fallthru
      _
    %415 = vsyncpa [#allocation3], 1

</llo_original>
